<compile_context>
chip_gen: v7x
topology: tpu7x:2x2x1
jax: 0.10.0
libtpu: 0.0.40
codegen_flags: <defaults>
</compile_context>

<pallas_src>
import functools

import jax
import jax.numpy as jnp
from jax.experimental import pallas as pl
from jax.experimental.pallas import tpu as pltpu


_LANE = 128
_NEG_BIG = -1e30  # finite "minus infinity" for masking padded class columns


def _round_up(v, m):
    return ((v + m - 1) // m) * m


def _pad_dim(x, axis, target):
    pad = target - x.shape[axis]
    if pad <= 0:
        return x
    widths = [(0, 0)] * x.ndim
    widths[axis] = (0, pad)
    return jnp.pad(x, widths)


# ---------------------------------------------------------------------------
# Fused kernel
# ---------------------------------------------------------------------------
def _fused_aggre_gcn_kernel(
    adj_ref, x_ref, w0_ref, b0_ref, wmid_ref, bmid_ref, wl_ref, bl_ref,
    out_ref,
    adj_sc, h_sc,
    *, n_mid_layers, nclass,
):
    # ---- 1) GCN normalization, computed once and cached in VMEM (bf16) ----
    # A_hat = D^-1/2 (A + I) D^-1/2.  Adjacency is symmetric, so the column
    # degree is a lane-axis sum (no XLU transpose of the [N,1] row degree),
    # and the +I is folded into a jnp.where (no explicit eye materialization).
    a = adj_ref[...].astype(jnp.float32)
    n = a.shape[0]
    row = jax.lax.broadcasted_iota(jnp.int32, (n, n), 0)
    col = jax.lax.broadcasted_iota(jnp.int32, (n, n), 1)
    a = jnp.where(row == col, a + 1.0, a)                         # add self loops
    d_row = jax.lax.rsqrt(jnp.sum(a, axis=-1, keepdims=True))     # [N, 1]
    d_col = jax.lax.rsqrt(jnp.sum(a, axis=0, keepdims=True))      # [1, N]
    adj_sc[...] = (d_row * a * d_col).astype(jnp.bfloat16)

    # ---- 2) layer 0 : Linear + relu (dropout = identity in eval mode) ----
    b0 = b0_ref[...]                                   # hoisted bias broadcast
    h0 = jnp.dot(x_ref[...], w0_ref[...], preferred_element_type=jnp.float32)
    h_sc[...] = jnp.maximum(h0 + b0, 0.0)

    a_hat = adj_sc[...]                                # load once, reuse for all layers

    # ---- 3) middle layers : GCNConv + relu (unrolled in-kernel layer loop) ----
    def mid_layer(l, carry):
        xw = jnp.dot(h_sc[...], wmid_ref[l], preferred_element_type=jnp.float32)
        y = jnp.dot(a_hat, xw.astype(jnp.bfloat16),
                    preferred_element_type=jnp.float32)
        y = y + bmid_ref[l]
        h_sc[...] = jnp.maximum(y, 0.0)                # f32 epilogue (v5e-safe)
        return carry

    jax.lax.fori_loop(0, n_mid_layers, mid_layer, 0, unroll=True)

    # ---- 4) last layer : GCNConv + log_softmax (f32 epilogue) ----
    bl = bl_ref[...]
    xw = jnp.dot(h_sc[...], wl_ref[...], preferred_element_type=jnp.float32)
    y = jnp.dot(a_hat, xw.astype(jnp.bfloat16), preferred_element_type=jnp.float32)
    y = y + bl
    # mask lane-padded class columns so they do not perturb the softmax
    cls = jax.lax.broadcasted_iota(jnp.int32, y.shape, 1)
    y = jnp.where(cls < nclass, y, _NEG_BIG)
    m = jnp.max(y, axis=-1, keepdims=True)
    z = y - m
    lse = jnp.log(jnp.sum(jnp.exp(z), axis=-1, keepdims=True))
    out_ref[...] = z - lse


# ---------------------------------------------------------------------------
# Wrapper
# ---------------------------------------------------------------------------
def aggre_gcn_forward(aggregated_feature, adj, params):
    """Fused eval-mode forward of AggreGCN.

    params: list of (W [in, out], b [1, out]) for each of the NumLayers layers
    (layer 0 is the Linear layer, the remaining ones are GCNConv layers).
    """
    n = adj.shape[0]
    nfeat = aggregated_feature.shape[1]
    nhid = params[0][0].shape[1]
    nclass = params[-1][0].shape[1]
    n_mid = len(params) - 2
    assert n_mid >= 0

    f_p = _round_up(nfeat, _LANE)
    h_p = _round_up(nhid, _LANE)
    c_p = _round_up(nclass, _LANE)

    # Zero-pad feature/hidden/class dims to 128 lanes (padded weight rows/cols
    # are zero, so the math is unchanged; padded class columns are masked in
    # the kernel and sliced off below).
    x_p = _pad_dim(aggregated_feature.astype(jnp.float32), 1, f_p)

    w0, b0 = params[0]
    w0_p = _pad_dim(_pad_dim(w0.astype(jnp.float32), 0, f_p), 1, h_p)
    b0_p = _pad_dim(b0.reshape(1, -1).astype(jnp.float32), 1, h_p)

    if n_mid > 0:
        wm_p = jnp.stack(
            [_pad_dim(_pad_dim(w.astype(jnp.float32), 0, h_p), 1, h_p)
             for w, _ in params[1:-1]])
        bm_p = jnp.stack(
            [_pad_dim(b.reshape(1, -1).astype(jnp.float32), 1, h_p)
             for _, b in params[1:-1]])
    else:  # keep shapes valid when NumLayers == 2 (loop body never runs)
        wm_p = jnp.zeros((1, h_p, h_p), jnp.float32)
        bm_p = jnp.zeros((1, 1, h_p), jnp.float32)

    wl, bl = params[-1]
    wl_p = _pad_dim(_pad_dim(wl.astype(jnp.float32), 0, h_p), 1, c_p)
    bl_p = _pad_dim(bl.reshape(1, -1).astype(jnp.float32), 1, c_p)

    inputs = (adj.astype(jnp.float32), x_p, w0_p, b0_p, wm_p, bm_p, wl_p, bl_p)

    # ---- explicit VMEM budget (leave headroom under v7x's 64 MiB) ----
    in_bytes = sum(int(a.size) * a.dtype.itemsize for a in inputs)
    out_bytes = n * c_p * 4
    scratch_bytes = n * n * 2 + n * h_p * 4            # bf16 A_hat + f32 h
    vmem_limit = int(min(
        max(2 * (in_bytes + out_bytes) + scratch_bytes + (4 << 20), 32 << 20),
        48 << 20))

    # ---- advisory cost estimate for the XLA scheduler ----
    flops = (
        6 * n * n                                        # normalization
        + 2 * n * f_p * h_p                              # layer 0 (Linear)
        + n_mid * (2 * n * h_p * h_p + 2 * n * n * h_p)  # middle GCN layers
        + 2 * n * h_p * c_p + 2 * n * n * c_p            # last GCN layer
    )
    transcendentals = 2 * n + n * c_p + n                # rsqrt + exp + log
    cost = pl.CostEstimate(flops=int(flops),
                           transcendentals=int(transcendentals),
                           bytes_accessed=int(in_bytes + out_bytes))

    kernel = functools.partial(_fused_aggre_gcn_kernel,
                               n_mid_layers=n_mid, nclass=nclass)
    vmem = pl.BlockSpec(memory_space=pltpu.MemorySpace.VMEM)

    out_p = pl.pallas_call(
        kernel,
        out_shape=jax.ShapeDtypeStruct((n, c_p), jnp.float32),
        in_specs=[vmem] * len(inputs),
        out_specs=vmem,
        scratch_shapes=[pltpu.VMEM((n, n), jnp.bfloat16),   # cached A_hat
                        pltpu.VMEM((n, h_p), jnp.float32)], # hidden state h
        compiler_params=pltpu.CompilerParams(vmem_limit_bytes=vmem_limit),
        cost_estimate=cost,
    )(*inputs)

    return out_p[:, :nclass]


# ---------------------------------------------------------------------------
# Demo
# ---------------------------------------------------------------------------
if __name__ == "__main__":
    N, nfeat, nhid, nclass, num_layers = 64, 32, 32, 8, 3
    dropout_p = 0.5  # inactive: forward implemented in eval mode (training=False)

    key = jax.random.PRNGKey(0)
    keys = jax.random.split(key, 2 + num_layers)
    k_feat, k_adj = keys[0], keys[1]

    # Inputs: aggregated node features [N, nfeat] and a dense symmetric adjacency [N, N].
    x = jax.random.normal(k_feat, (N, nfeat), jnp.float32)
    a = (jax.random.uniform(k_adj, (N, N)) < 0.15).astype(jnp.float32)
    adj = jnp.maximum(a, a.T) * (1.0 - jnp.eye(N, dtype=jnp.float32))

    # Deterministic parameter init matching torch Linear / GCNConv shapes (W as [in, out]).
    dims = [(nfeat, nhid)] + [(nhid, nhid)] * (num_layers - 2) + [(nhid, nclass)]
    params = []
    for i, (din, dout) in enumerate(dims):
        kw, kb = jax.random.split(keys[2 + i])
        scale = 1.0 / float(din) ** 0.5
        w = jax.random.uniform(kw, (din, dout), jnp.float32, -scale, scale)
        b = jax.random.uniform(kb, (1, dout), jnp.float32, -scale, scale)
        params.append((w, b))

    out = aggre_gcn_forward(x, adj, params)
    out = jax.block_until_ready(out)
    assert out.shape == (N, nclass)
    # log_softmax sanity: rows exponentiate-sum to 1 (f32 epilogue in-kernel)
    row_sums = jnp.sum(jnp.exp(out), axis=-1)
    assert bool(jnp.all(jnp.abs(row_sums - 1.0) < 1e-4))
    print("KERNEL_OK")
</pallas_src>

<mosaic_0001>
module attributes {stable_mosaic.version = 11 : i64} {
  func.func @_fused_aggre_gcn_kernel(%arg0: memref<64x64xf32, #tpu.memory_space<vmem>>, %arg1: memref<64x128xf32, #tpu.memory_space<vmem>>, %arg2: memref<128x128xf32, #tpu.memory_space<vmem>>, %arg3: memref<1x128xf32, #tpu.memory_space<vmem>>, %arg4: memref<1x128x128xf32, #tpu.memory_space<vmem>>, %arg5: memref<1x1x128xf32, #tpu.memory_space<vmem>>, %arg6: memref<128x128xf32, #tpu.memory_space<vmem>>, %arg7: memref<1x128xf32, #tpu.memory_space<vmem>>, %arg8: memref<64x128xf32, #tpu.memory_space<vmem>>, %arg9: memref<64x64xbf16, #tpu.memory_space<vmem>>, %arg10: memref<64x128xf32, #tpu.memory_space<vmem>>) attributes {dimension_semantics = [], scalar_prefetch = 0 : i64, scratch_operands = 2 : i64, tpu.core_type = #tpu.core_type<tc>} {
    %c0 = arith.constant 0 : index
    %c0_0 = arith.constant 0 : index
    %0 = vector.load %arg0[%c0, %c0_0] : memref<64x64xf32, #tpu.memory_space<vmem>>, vector<64x64xf32>
    %1 = tpu.iota {dimensions = array<i32: 0>} : vector<64x64xi32>
    %2 = tpu.iota {dimensions = array<i32: 1>} : vector<64x64xi32>
    %3 = arith.cmpi eq, %1, %2 : vector<64x64xi32>
    %cst = arith.constant 1.000000e+00 : f32
    %4 = vector.broadcast %cst : f32 to vector<64x64xf32>
    %5 = arith.addf %0, %4 : vector<64x64xf32>
    %6 = arith.select %3, %5, %0 : vector<64x64xi1>, vector<64x64xf32>
    %cst_1 = arith.constant dense<0.000000e+00> : vector<64xf32>
    %7 = vector.multi_reduction <add>, %6, %cst_1 [1] : vector<64x64xf32> to vector<64xf32>
    %8 = vector.shape_cast %7 : vector<64xf32> to vector<64x1xf32>
    %9 = math.rsqrt %8 : vector<64x1xf32>
    %cst_2 = arith.constant dense<0.000000e+00> : vector<64xf32>
    %10 = vector.multi_reduction <add>, %6, %cst_2 [0] : vector<64x64xf32> to vector<64xf32>
    %11 = vector.shape_cast %10 : vector<64xf32> to vector<1x64xf32>
    %12 = math.rsqrt %11 : vector<1x64xf32>
    %13 = vector.broadcast %9 : vector<64x1xf32> to vector<64x64xf32>
    %14 = arith.mulf %13, %6 : vector<64x64xf32>
    %15 = vector.broadcast %12 : vector<1x64xf32> to vector<64x64xf32>
    %16 = arith.mulf %14, %15 : vector<64x64xf32>
    %17 = arith.truncf %16 : vector<64x64xf32> to vector<64x64xbf16>
    %c0_3 = arith.constant 0 : index
    %c0_4 = arith.constant 0 : index
    %18 = vector.load %arg9[%c0_3, %c0_4] : memref<64x64xbf16, #tpu.memory_space<vmem>>, vector<64x64xbf16>
    tpu.vector_store %arg9[%c0_3, %c0_4], %17 {strides = array<i32>} : memref<64x64xbf16, #tpu.memory_space<vmem>>, vector<64x64xbf16>,
    %c0_5 = arith.constant 0 : index
    %c0_6 = arith.constant 0 : index
    %19 = vector.load %arg3[%c0_5, %c0_6] : memref<1x128xf32, #tpu.memory_space<vmem>>, vector<1x128xf32>
    %c0_7 = arith.constant 0 : index
    %c0_8 = arith.constant 0 : index
    %20 = vector.load %arg1[%c0_7, %c0_8] : memref<64x128xf32, #tpu.memory_space<vmem>>, vector<64x128xf32>
    %c0_9 = arith.constant 0 : index
    %c0_10 = arith.constant 0 : index
    %21 = vector.load %arg2[%c0_9, %c0_10] : memref<128x128xf32, #tpu.memory_space<vmem>>, vector<128x128xf32>
    %cst_11 = arith.constant dense<0.000000e+00> : vector<64x128xf32>
    %22 = tpu.matmul %20, %21, %cst_11 {dimension_numbers = #tpu.dot_dimension_numbers<[1], [0], [0], [1], [0, 0, 1, 1], [], []>} : vector<64x128xf32>, vector<128x128xf32>, vector<64x128xf32> -> vector<64x128xf32>
    %23 = vector.broadcast %19 : vector<1x128xf32> to vector<64x128xf32>
    %24 = arith.addf %22, %23 : vector<64x128xf32>
    %cst_12 = arith.constant 0.000000e+00 : f32
    %25 = vector.broadcast %cst_12 : f32 to vector<64x128xf32>
    %26 = arith.maximumf %24, %25 : vector<64x128xf32>
    %c0_13 = arith.constant 0 : index
    %c0_14 = arith.constant 0 : index
    %27 = vector.load %arg10[%c0_13, %c0_14] : memref<64x128xf32, #tpu.memory_space<vmem>>, vector<64x128xf32>
    tpu.vector_store %arg10[%c0_13, %c0_14], %26 {strides = array<i32>} : memref<64x128xf32, #tpu.memory_space<vmem>>, vector<64x128xf32>,
    %c0_15 = arith.constant 0 : index
    %c0_16 = arith.constant 0 : index
    %28 = vector.load %arg9[%c0_15, %c0_16] : memref<64x64xbf16, #tpu.memory_space<vmem>>, vector<64x64xbf16>
    %c0_i32 = arith.constant 0 : i32
    %c0_17 = arith.constant 0 : index
    %c0_18 = arith.constant 0 : index
    %29 = vector.load %arg10[%c0_17, %c0_18] : memref<64x128xf32, #tpu.memory_space<vmem>>, vector<64x128xf32>
    %30 = arith.index_cast %c0_i32 : i32 to index
    %c0_19 = arith.constant 0 : index
    %c0_20 = arith.constant 0 : index
    %31 = vector.load %arg4[%30, %c0_19, %c0_20] : memref<1x128x128xf32, #tpu.memory_space<vmem>>, vector<1x128x128xf32>
    %32 = vector.shape_cast %31 : vector<1x128x128xf32> to vector<128x128xf32>
    %cst_21 = arith.constant dense<0.000000e+00> : vector<64x128xf32>
    %33 = tpu.matmul %29, %32, %cst_21 {dimension_numbers = #tpu.dot_dimension_numbers<[1], [0], [0], [1], [0, 0, 1, 1], [], []>} : vector<64x128xf32>, vector<128x128xf32>, vector<64x128xf32> -> vector<64x128xf32>
    %34 = arith.truncf %33 : vector<64x128xf32> to vector<64x128xbf16>
    %cst_22 = arith.constant dense<0.000000e+00> : vector<64x128xf32>
    %35 = tpu.matmul %28, %34, %cst_22 {dimension_numbers = #tpu.dot_dimension_numbers<[1], [0], [0], [1], [0, 0, 1, 1], [], []>} : vector<64x64xbf16>, vector<64x128xbf16>, vector<64x128xf32> -> vector<64x128xf32>
    %36 = arith.index_cast %c0_i32 : i32 to index
    %c0_23 = arith.constant 0 : index
    %c0_24 = arith.constant 0 : index
    %37 = vector.load %arg5[%36, %c0_23, %c0_24] : memref<1x1x128xf32, #tpu.memory_space<vmem>>, vector<1x1x128xf32>
    %38 = vector.shape_cast %37 : vector<1x1x128xf32> to vector<1x128xf32>
    %39 = vector.broadcast %38 : vector<1x128xf32> to vector<64x128xf32>
    %40 = arith.addf %35, %39 : vector<64x128xf32>
    %cst_25 = arith.constant 0.000000e+00 : f32
    %41 = vector.broadcast %cst_25 : f32 to vector<64x128xf32>
    %42 = arith.maximumf %40, %41 : vector<64x128xf32>
    %c0_26 = arith.constant 0 : index
    %c0_27 = arith.constant 0 : index
    %43 = vector.load %arg10[%c0_26, %c0_27] : memref<64x128xf32, #tpu.memory_space<vmem>>, vector<64x128xf32>
    tpu.vector_store %arg10[%c0_26, %c0_27], %42 {strides = array<i32>} : memref<64x128xf32, #tpu.memory_space<vmem>>, vector<64x128xf32>,
    %c1_i32 = arith.constant 1 : i32
    %c0_28 = arith.constant 0 : index
    %c0_29 = arith.constant 0 : index
    %44 = vector.load %arg7[%c0_28, %c0_29] : memref<1x128xf32, #tpu.memory_space<vmem>>, vector<1x128xf32>
    %c0_30 = arith.constant 0 : index
    %c0_31 = arith.constant 0 : index
    %45 = vector.load %arg10[%c0_30, %c0_31] : memref<64x128xf32, #tpu.memory_space<vmem>>, vector<64x128xf32>
    %c0_32 = arith.constant 0 : index
    %c0_33 = arith.constant 0 : index
    %46 = vector.load %arg6[%c0_32, %c0_33] : memref<128x128xf32, #tpu.memory_space<vmem>>, vector<128x128xf32>
    %cst_34 = arith.constant dense<0.000000e+00> : vector<64x128xf32>
    %47 = tpu.matmul %45, %46, %cst_34 {dimension_numbers = #tpu.dot_dimension_numbers<[1], [0], [0], [1], [0, 0, 1, 1], [], []>} : vector<64x128xf32>, vector<128x128xf32>, vector<64x128xf32> -> vector<64x128xf32>
    %48 = arith.truncf %47 : vector<64x128xf32> to vector<64x128xbf16>
    %cst_35 = arith.constant dense<0.000000e+00> : vector<64x128xf32>
    %49 = tpu.matmul %28, %48, %cst_35 {dimension_numbers = #tpu.dot_dimension_numbers<[1], [0], [0], [1], [0, 0, 1, 1], [], []>} : vector<64x64xbf16>, vector<64x128xbf16>, vector<64x128xf32> -> vector<64x128xf32>
    %50 = vector.broadcast %44 : vector<1x128xf32> to vector<64x128xf32>
    %51 = arith.addf %49, %50 : vector<64x128xf32>
    %52 = tpu.iota {dimensions = array<i32: 1>} : vector<64x128xi32>
    %c8_i32 = arith.constant 8 : i32
    %53 = vector.broadcast %c8_i32 : i32 to vector<64x128xi32>
    %54 = arith.cmpi slt, %52, %53 : vector<64x128xi32>
    %cst_36 = arith.constant -1.000000e+30 : f32
    %55 = vector.broadcast %cst_36 : f32 to vector<64x128xf32>
    %56 = arith.select %54, %51, %55 : vector<64x128xi1>, vector<64x128xf32>
    %cst_37 = arith.constant dense<0xFF800000> : vector<64xf32>
    %57 = vector.multi_reduction <maximumf>, %56, %cst_37 [1] : vector<64x128xf32> to vector<64xf32>
    %58 = vector.shape_cast %57 : vector<64xf32> to vector<64x1xf32>
    %59 = vector.broadcast %58 : vector<64x1xf32> to vector<64x128xf32>
    %60 = arith.subf %56, %59 : vector<64x128xf32>
    %61 = math.exp %60 : vector<64x128xf32>
    %cst_38 = arith.constant dense<0.000000e+00> : vector<64xf32>
    %62 = vector.multi_reduction <add>, %61, %cst_38 [1] : vector<64x128xf32> to vector<64xf32>
    %63 = vector.shape_cast %62 : vector<64xf32> to vector<64x1xf32>
    %64 = math.log %63 : vector<64x1xf32>
    %65 = vector.broadcast %64 : vector<64x1xf32> to vector<64x128xf32>
    %66 = arith.subf %60, %65 : vector<64x128xf32>
    %c0_39 = arith.constant 0 : index
    %c0_40 = arith.constant 0 : index
    %67 = vector.load %arg8[%c0_39, %c0_40] : memref<64x128xf32, #tpu.memory_space<vmem>>, vector<64x128xf32>
    tpu.vector_store %arg8[%c0_39, %c0_40], %66 {strides = array<i32>} : memref<64x128xf32, #tpu.memory_space<vmem>>, vector<64x128xf32>,
    return
  }
}

</mosaic_0001>

<llo_original>
// kernel: tpu_custom_call.1
$region0: #{tpu_custom_call.1}
  #allocation0 [shape = 'u32[]', space=smem, size = 0x4, offset = 0x4, fixed_abs, tag = 'smem constant byte address 0x4 - core index']
  #allocation1 [shape = 'u32[144,128]{1,0:T(1,128)}', space=vmem, size = 0x12000, scoped, tag = 'internal scratch']
  #allocation2 [shape = 'bf16[64,64]{1,0:T(16,128)(2,1)}', space=vmem, size = 0x4000, scoped, tag = 'scratch operand']
  #allocation3 [shape = 'f32[64,128]{1,0:T(8,128)}', space=vmem, size = 0x8000, scoped, tag = 'scratch operand']
  %s0 = inlined_call_operand.hbm [shape: f32[64,64], index: 0, kind: input, shape index: {}]
  %s1 = inlined_call_operand.hbm [shape: f32[64,128], index: 1, kind: input, shape index: {}]
  %s2 = inlined_call_operand.hbm [shape: f32[128,128], index: 2, kind: input, shape index: {}]
  %s3 = inlined_call_operand.vmem [shape: f32[1,128], index: 3, kind: input, shape index: {}]
  %s4 = inlined_call_operand.hbm [shape: f32[1,128,128], index: 4, kind: input, shape index: {}]
  %s5 = inlined_call_operand.vmem [shape: f32[1,1,128], index: 5, kind: input, shape index: {}]
  %s6 = inlined_call_operand.hbm [shape: f32[128,128], index: 6, kind: input, shape index: {}]
  %s7 = inlined_call_operand.vmem [shape: f32[1,128], index: 7, kind: input, shape index: {}]
  %s8 = inlined_call_operand.hbm [shape: f32[64,128], index: 8, kind: output, shape index: {}]
  %s9 = sld [smem:[#allocation0]]
  $region62: #{tpu_custom_call.1} parent=0
    _
  %s11 = ssub.s32 1, %s9
  %s12 = scalar_select 0, %s11, %s9
  $region1: #{tpu_custom_call.1} parent=0
    #allocation4 [shape = 'u8[32768]{0}', space=vmem, size = 0x8000, scoped, tag = 'input window, operand 0, single buffered']
    #allocation5 [shape = 's32[1]{0}', space=sflag, size = 0x4, scoped, tag = 'scoped memory for tpu_custom_call.1']
    #allocation6 [shape = 's32[1]{0}', space=sflag, size = 0x4, scoped, tag = 'scoped memory for tpu_custom_call.1']
    #allocation7 [shape = 'u8[32768]{0}', space=vmem, size = 0x8000, scoped, tag = 'input window, operand 1, single buffered']
    #allocation8 [shape = 's32[1]{0}', space=sflag, size = 0x4, scoped, tag = 'scoped memory for tpu_custom_call.1']
    #allocation9 [shape = 'u8[65536]{0}', space=vmem, size = 0x10000, scoped, tag = 'input window, operand 2, single buffered']
    #allocation10 [shape = 'u8[65536]{0}', space=vmem, size = 0x10000, scoped, tag = 'input window, operand 4, single buffered']
    #allocation11 [shape = 's32[1]{0}', space=sflag, size = 0x4, scoped, tag = 'scoped memory for tpu_custom_call.1']
    #allocation12 [shape = 'u8[65536]{0}', space=vmem, size = 0x10000, scoped, tag = 'input window, operand 6, single buffered']
    #allocation13 [shape = 'u8[32768]{0}', space=vmem, size = 0x8000, scoped, tag = 'output window, operand 0, single buffered']
    %13 = vsyncpa [#allocation5], 0
    %14 = vsyncpa [#allocation8], 0
    %15 = vsyncpa [#allocation11], 0
    %16 = vsyncpa [#allocation6], 0
    // Predicated region
    $region2: #{tpu_custom_call.1} parent=1 // pred_check
      _
    $region3: #{tpu_custom_call.1} parent=1 // pred_check_branch
      %18 = sbr.rel (0) target = $region5
    $region4: #{tpu_custom_call.1} parent=1 // pred_region
      %s20 = ssub.s32 1024, 1024
      %21 = vsyncadd [#allocation5], %s20
      %s22 = sshll.u32 [#allocation4], 4
      %s23 = int_to_ptr.vmem [resolvable:$true] %s22
      %28 = dma.hbm_to_vmem [thread:$0]  %s0, 1024, %s23, [#allocation5], 128, 128, 8
    $region5: #{tpu_custom_call.1} parent=1 // pred_fallthru
      _
    // Predicated region
    $region6: #{tpu_custom_call.1} parent=1 // pred_check
      _
    $region7: #{tpu_custom_call.1} parent=1 // pred_check_branch
      %30 = sbr.rel (0) target = $region9
    $region8: #{tpu_custom_call.1} parent=1 // pred_region
      %s32 = ssub.s32 1024, 1024
      %33 = vsyncadd [#allocation8], %s32
      %s34 = sshll.u32 [#allocation7], 4
      %s35 = int_to_ptr.vmem [resolvable:$true] %s34
      %40 = dma.hbm_to_vmem [thread:$0]  %s1, 1024, %s35, [#allocation8], 128, 128, 8
    $region9: #{tpu_custom_call.1} parent=1 // pred_fallthru
      _
    // Predicated region
    $region10: #{tpu_custom_call.1} parent=1 // pred_check
      _
    $region11: #{tpu_custom_call.1} parent=1 // pred_check_branch
      %42 = sbr.rel (0) target = $region13
    $region12: #{tpu_custom_call.1} parent=1 // pred_region
      %s44 = ssub.s32 2048, 2048
      %45 = vsyncadd [#allocation8], %s44
      %s46 = sshll.u32 [#allocation9], 4
      %s47 = int_to_ptr.vmem [resolvable:$true] %s46
      %52 = dma.hbm_to_vmem [thread:$0]  %s2, 2048, %s47, [#allocation8], 128, 128, 8
    $region13: #{tpu_custom_call.1} parent=1 // pred_fallthru
      _
    // Predicated region
    $region14: #{tpu_custom_call.1} parent=1 // pred_check
      _
    $region15: #{tpu_custom_call.1} parent=1 // pred_check_branch
      %54 = sbr.rel (0) target = $region17
    $region16: #{tpu_custom_call.1} parent=1 // pred_region
      _
    $region17: #{tpu_custom_call.1} parent=1 // pred_fallthru
      _
    // Predicated region
    $region18: #{tpu_custom_call.1} parent=1 // pred_check
      _
    $region19: #{tpu_custom_call.1} parent=1 // pred_check_branch
      %56 = sbr.rel (0) target = $region21
    $region20: #{tpu_custom_call.1} parent=1 // pred_region
      %s58 = ssub.s32 2048, 2048
      %59 = vsyncadd [#allocation11], %s58
      %s60 = sshll.u32 [#allocation10], 4
      %s61 = int_to_ptr.vmem [resolvable:$true] %s60
      %66 = dma.hbm_to_vmem [thread:$0]  %s4, 2048, %s61, [#allocation11], 128, 128, 8
    $region21: #{tpu_custom_call.1} parent=1 // pred_fallthru
      _
    // Predicated region
    $region22: #{tpu_custom_call.1} parent=1 // pred_check
      _
    $region23: #{tpu_custom_call.1} parent=1 // pred_check_branch
      %68 = sbr.rel (0) target = $region25
    $region24: #{tpu_custom_call.1} parent=1 // pred_region
      _
    $region25: #{tpu_custom_call.1} parent=1 // pred_fallthru
      _
    // Predicated region
    $region26: #{tpu_custom_call.1} parent=1 // pred_check
      _
    $region27: #{tpu_custom_call.1} parent=1 // pred_check_branch
      %70 = sbr.rel (0) target = $region29
    $region28: #{tpu_custom_call.1} parent=1 // pred_region
      %s72 = ssub.s32 2048, 2048
      %73 = vsyncadd [#allocation11], %s72
      %s74 = sshll.u32 [#allocation12], 4
      %s75 = int_to_ptr.vmem [resolvable:$true] %s74
      %80 = dma.hbm_to_vmem [thread:$0]  %s6, 2048, %s75, [#allocation11], 128, 128, 8
    $region29: #{tpu_custom_call.1} parent=1 // pred_fallthru
      _
    // Predicated region
    $region30: #{tpu_custom_call.1} parent=1 // pred_check
      _
    $region31: #{tpu_custom_call.1} parent=1 // pred_check_branch
      %82 = sbr.rel (0) target = $region33
    $region32: #{tpu_custom_call.1} parent=1 // pred_region
      _
    $region33: #{tpu_custom_call.1} parent=1 // pred_fallthru
      _
    // Predicated region
    $region34: #{tpu_custom_call.1} parent=1 // pred_check
      _
    $region35: #{tpu_custom_call.1} parent=1 // pred_check_branch
      %84 = sbr.rel (0) target = $region37
    $region36: #{tpu_custom_call.1} parent=1 // pred_region
      %85 = dma.done [#allocation5], 1024
    $region37: #{tpu_custom_call.1} parent=1 // pred_fallthru
      _
    // Predicated region
    $region38: #{tpu_custom_call.1} parent=1 // pred_check
      _
    $region39: #{tpu_custom_call.1} parent=1 // pred_check_branch
      %87 = sbr.rel (0) target = $region41
    $region40: #{tpu_custom_call.1} parent=1 // pred_region
      %88 = dma.done [#allocation8], 1024
    $region41: #{tpu_custom_call.1} parent=1 // pred_fallthru
      _
    // Predicated region
    $region42: #{tpu_custom_call.1} parent=1 // pred_check
      _
    $region43: #{tpu_custom_call.1} parent=1 // pred_check_branch
      %90 = sbr.rel (0) target = $region45
    $region44: #{tpu_custom_call.1} parent=1 // pred_region
      %91 = dma.done [#allocation8], 2048
    $region45: #{tpu_custom_call.1} parent=1 // pred_fallthru
      _
    // Predicated region
    $region46: #{tpu_custom_call.1} parent=1 // pred_check
      _
    $region47: #{tpu_custom_call.1} parent=1 // pred_check_branch
      %93 = sbr.rel (0) target = $region49
    $region48: #{tpu_custom_call.1} parent=1 // pred_region
      %94 = dma.done [#allocation11], 2048
    $region49: #{tpu_custom_call.1} parent=1 // pred_fallthru
      _
    // Predicated region
    $region50: #{tpu_custom_call.1} parent=1 // pred_check
      _
    $region51: #{tpu_custom_call.1} parent=1 // pred_check_branch
      %96 = sbr.rel (0) target = $region53
    $region52: #{tpu_custom_call.1} parent=1 // pred_region
      %97 = dma.done [#allocation11], 2048
    $region53: #{tpu_custom_call.1} parent=1 // pred_fallthru
      _
    %v99 = vld [vmem:[#allocation4] sm:$0xff]
    %v100 = vld [vmem:[#allocation4 + $0x8] sm:$0xff]
    %v101 = vld [vmem:[#allocation4 + $0x10] sm:$0xff]
    %v102 = vld [vmem:[#allocation4 + $0x18] sm:$0xff]
    %v103 = vld [vmem:[#allocation4 + $0x20] sm:$0xff]
    %v104 = vld [vmem:[#allocation4 + $0x28] sm:$0xff]
    %v105 = vld [vmem:[#allocation4 + $0x30] sm:$0xff]
    %v106 = vld [vmem:[#allocation4 + $0x38] sm:$0xff]
    %v107 = vlaneseq
    %v108 = vshrl.u32 %v107, 7
    %v109 = vadd.s32 %v108, 8
    %v110 = vadd.s32 %v108, 16
    %v111 = vadd.s32 %v108, 24
    %v112 = vadd.s32 %v108, 32
    %v113 = vadd.s32 %v108, 40
    %v114 = vadd.s32 %v108, 48
    %v115 = vadd.s32 %v108, 56
    %v116 = vlaneseq
    %v117 = vand.u32 %v116, 127
    %vm118 = vcmp.eq.s32.totalorder %v108, %v117
    %vm119 = vcmp.eq.s32.totalorder %v109, %v117
    %vm120 = vcmp.eq.s32.totalorder %v110, %v117
    %vm121 = vcmp.eq.s32.totalorder %v111, %v117
    %vm122 = vcmp.eq.s32.totalorder %v112, %v117
    %vm123 = vcmp.eq.s32.totalorder %v113, %v117
    %vm124 = vcmp.eq.s32.totalorder %v114, %v117
    %vm125 = vcmp.eq.s32.totalorder %v115, %v117
    %v126 = vadd.f32 %v99, 1.0
    %v127 = vadd.f32 %v100, 1.0
    %v128 = vadd.f32 %v101, 1.0
    %v129 = vadd.f32 %v102, 1.0
    %v130 = vadd.f32 %v103, 1.0
    %v131 = vadd.f32 %v104, 1.0
    %v132 = vadd.f32 %v105, 1.0
    %v133 = vadd.f32 %v106, 1.0
    %v134 = vsel %vm118, %v126, %v99
    %v135 = vsel %vm119, %v127, %v100
    %v136 = vsel %vm120, %v128, %v101
    %v137 = vsel %vm121, %v129, %v102
    %v138 = vsel %vm122, %v130, %v103
    %v139 = vsel %vm123, %v131, %v104
    %v140 = vsel %vm124, %v132, %v105
    %v141 = vsel %vm125, %v133, %v106
    %vm142 = vcmask 523264
    %v143 = vsel %vm142, %v134, 0.0
    %144 = vadd.xlane.f32.xlu0 %v143
    %v145 = vpop.xlane.xlu0 %144
    %v146 = vsel %vm142, %v135, 0.0
    %147 = vadd.xlane.f32.xlu0 %v146
    %v148 = vpop.xlane.xlu0 %147
    %v149 = vsel %vm142, %v136, 0.0
    %150 = vadd.xlane.f32.xlu0 %v149
    %v151 = vpop.xlane.xlu0 %150
    %v152 = vsel %vm142, %v137, 0.0
    %153 = vadd.xlane.f32.xlu0 %v152
    %v154 = vpop.xlane.xlu0 %153
    %v155 = vsel %vm142, %v138, 0.0
    %156 = vadd.xlane.f32.xlu0 %v155
    %v157 = vpop.xlane.xlu0 %156
    %v158 = vsel %vm142, %v139, 0.0
    %159 = vadd.xlane.f32.xlu0 %v158
    %v160 = vpop.xlane.xlu0 %159
    %v161 = vsel %vm142, %v140, 0.0
    %162 = vadd.xlane.f32.xlu0 %v161
    %v163 = vpop.xlane.xlu0 %162
    %v164 = vsel %vm142, %v141, 0.0
    %165 = vadd.xlane.f32.xlu0 %v164
    %v166 = vpop.xlane.xlu0 %165
    %v167 = vrsqrt.pop %v145
    %v168 = vrsqrt.pop %v148
    %v169 = vrsqrt.pop %v151
    %v170 = vrsqrt.pop %v154
    %v171 = vrsqrt.pop %v157
    %v172 = vrsqrt.pop %v160
    %v173 = vrsqrt.pop %v163
    %v174 = vrsqrt.pop %v166
    %v175 = vadd.f32 %v143, %v146
    %v176 = vadd.f32 %v175, %v149
    %v177 = vadd.f32 %v176, %v152
    %v178 = vadd.f32 %v177, %v155
    %v179 = vadd.f32 %v178, %v158
    %v180 = vadd.f32 %v179, %v161
    %v181 = vadd.f32 %v180, %v164
    %v182 = vrot.slane %v181, 4
    %v183 = vadd.f32 %v181, %v182
    %v184 = vrot.slane %v183, 2
    %v185 = vadd.f32 %v183, %v184
    %v186 = vrot.slane %v185, 1
    %v187 = vadd.f32 %v185, %v186
    %v188 = vrsqrt.pop %v187
    %v189 = vmul.f32 %v167, %v134
    %v190 = vmul.f32 %v168, %v135
    %v191 = vmul.f32 %v169, %v136
    %v192 = vmul.f32 %v170, %v137
    %v193 = vmul.f32 %v171, %v138
    %v194 = vmul.f32 %v172, %v139
    %v195 = vmul.f32 %v173, %v140
    %v196 = vmul.f32 %v174, %v141
    %v197 = vmul.f32 %v189, %v188
    %v198 = vmul.f32 %v190, %v188
    %v199 = vmul.f32 %v191, %v188
    %v200 = vmul.f32 %v192, %v188
    %v201 = vmul.f32 %v193, %v188
    %v202 = vmul.f32 %v194, %v188
    %v203 = vmul.f32 %v195, %v188
    %v204 = vmul.f32 %v196, %v188
    %v205 = vpack.c.bf16 %v198, %v197
    %v206 = vpack.c.bf16 %v200, %v199
    %v207 = vpack.c.bf16 %v202, %v201
    %v208 = vpack.c.bf16 %v204, %v203
    %209 = vst.msk [vmem:[#allocation2] sm:$0xff] %vm142, %v205
    %210 = vst.msk [vmem:[#allocation2 + $0x8] sm:$0xff] %vm142, %v206
    %211 = vst.msk [vmem:[#allocation2 + $0x10] sm:$0xff] %vm142, %v207
    %212 = vst.msk [vmem:[#allocation2 + $0x18] sm:$0xff] %vm142, %v208
    %v213 = vld [vmem:[%s3] sm:$0x1]
    %v214 = vld [vmem:[#allocation7] sm:$0xff]
    %v215 = vld [vmem:[#allocation7 + $0x8] sm:$0xff]
    %v216 = vld [vmem:[#allocation7 + $0x10] sm:$0xff]
    %v217 = vld [vmem:[#allocation7 + $0x18] sm:$0xff]
    %v218 = vld [vmem:[#allocation7 + $0x20] sm:$0xff]
    %v219 = vld [vmem:[#allocation7 + $0x28] sm:$0xff]
    %v220 = vld [vmem:[#allocation7 + $0x30] sm:$0xff]
    %v221 = vld [vmem:[#allocation7 + $0x38] sm:$0xff]
    %v222 = vld [vmem:[#allocation9] sm:$0xff]
    %v223 = vld [vmem:[#allocation9 + $0x8] sm:$0xff]
    %v224 = vld [vmem:[#allocation9 + $0x10] sm:$0xff]
    %v225 = vld [vmem:[#allocation9 + $0x18] sm:$0xff]
    %v226 = vld [vmem:[#allocation9 + $0x20] sm:$0xff]
    %v227 = vld [vmem:[#allocation9 + $0x28] sm:$0xff]
    %v228 = vld [vmem:[#allocation9 + $0x30] sm:$0xff]
    %v229 = vld [vmem:[#allocation9 + $0x38] sm:$0xff]
    %v230 = vld [vmem:[#allocation9 + $0x40] sm:$0xff]
    %v231 = vld [vmem:[#allocation9 + $0x48] sm:$0xff]
    %v232 = vld [vmem:[#allocation9 + $0x50] sm:$0xff]
    %v233 = vld [vmem:[#allocation9 + $0x58] sm:$0xff]
    %v234 = vld [vmem:[#allocation9 + $0x60] sm:$0xff]
    %v235 = vld [vmem:[#allocation9 + $0x68] sm:$0xff]
    %v236 = vld [vmem:[#allocation9 + $0x70] sm:$0xff]
    %v237 = vld [vmem:[#allocation9 + $0x78] sm:$0xff]
    %v239 = vlaneseq
    %v240 = vshrl.u32 %v239, 7
    %v241 = vsub.s32 0, %v240
    %v242 = vrot.slane %v213, %v241
    %244 = vmatprep.subr.mxu0 0.0
    %245 = vmatpush1.msra.mxu0 %v222
    %246 = vmatprep.subr.mxu0 0.0
    %247 = vmatpush1.msra.mxu0 %v223
    %248 = vmatprep.subr.mxu0 0.0
    %249 = vmatpush1.msra.mxu0 %v224
    %250 = vmatprep.subr.mxu0 0.0
    %251 = vmatpush1.msra.mxu0 %v225
    %252 = vmatprep.subr.mxu0 0.0
    %253 = vmatpush1.msra.mxu0 %v226
    %254 = vmatprep.subr.mxu0 0.0
    %255 = vmatpush1.msra.mxu0 %v227
    %256 = vmatprep.subr.mxu0 0.0
    %257 = vmatpush1.msra.mxu0 %v228
    %258 = vmatprep.subr.mxu0 0.0
    %259 = vmatpush1.msra.mxu0 %v229
    %260 = vmatprep.subr.mxu0 0.0
    %261 = vmatpush1.msra.mxu0 %v230
    %262 = vmatprep.subr.mxu0 0.0
    %263 = vmatpush1.msra.mxu0 %v231
    %264 = vmatprep.subr.mxu0 0.0
    %265 = vmatpush1.msra.mxu0 %v232
    %266 = vmatprep.subr.mxu0 0.0
    %267 = vmatpush1.msra.mxu0 %v233
    %268 = vmatprep.subr.mxu0 0.0
    %269 = vmatpush1.msra.mxu0 %v234
    %270 = vmatprep.subr.mxu0 0.0
    %271 = vmatpush1.msra.mxu0 %v235
    %272 = vmatprep.subr.mxu0 0.0
    %273 = vmatpush1.msra.mxu0 %v236
    %274 = vmatprep.subr.mxu0 0.0
    %275 = vmatpush1.msra.mxu0 %v237
    %276 = vmatprep.subr.mxu0 0.0
    %277 = vmatpush1.msra.mxu0 0.0
    %278 = vmatprep.subr.mxu0 0.0
    %279 = vmatpush1.msra.mxu0 0.0
    %280 = vmatprep.subr.mxu0 0.0
    %281 = vmatpush1.msra.mxu0 0.0
    %282 = vmatprep.subr.mxu0 0.0
    %283 = vmatpush1.msra.mxu0 0.0
    %284 = vmatprep.subr.mxu0 0.0
    %285 = vmatpush1.msra.mxu0 0.0
    %286 = vmatprep.subr.mxu0 0.0
    %287 = vmatpush1.msra.mxu0 0.0
    %288 = vmatprep.subr.mxu0 0.0
    %289 = vmatpush1.msra.mxu0 0.0
    %290 = vmatprep.subr.mxu0 0.0
    %291 = vmatpush1.msra.mxu0 0.0
    %292 = vmatprep.subr.mxu0 0.0
    %293 = vmatpush1.msra.mxu0 0.0
    %294 = vmatprep.subr.mxu0 0.0
    %295 = vmatpush1.msra.mxu0 0.0
    %296 = vmatprep.subr.mxu0 0.0
    %297 = vmatpush1.msra.mxu0 0.0
    %298 = vmatprep.subr.mxu0 0.0
    %299 = vmatpush1.msra.mxu0 0.0
    %300 = vmatprep.subr.mxu0 0.0
    %301 = vmatpush1.msra.mxu0 0.0
    %302 = vmatprep.subr.mxu0 0.0
    %303 = vmatpush1.msra.mxu0 0.0
    %304 = vmatprep.subr.mxu0 0.0
    %305 = vmatpush1.msra.mxu0 0.0
    %306 = vmatprep.subr.mxu0 0.0
    %307 = vmatpush1.msra.mxu0 0.0
    %308 = vmatprep.mubr.f32.mxu0 0.0
    %309 = vmatmul.mubr.f32.gmra.mrb[0].mxu0 %v214
    %v310 = vpop.f32.mrb[0].mxu0
    %v311 = vadd.f32 %v242, %v310
    %v312 = vpop.f32.mrb[0].mxu0
    %313 = vmatprep.mubr.f32.mxu0 0.0
    %314 = vmatmul.mubr.f32.gmra.mrb[0].mxu0 %v215
    %v315 = vpop.f32.mrb[0].mxu0
    %v316 = vadd.f32 %v242, %v315
    %v317 = vpop.f32.mrb[0].mxu0
    %318 = vmatprep.mubr.f32.mxu0 0.0
    %319 = vmatmul.mubr.f32.gmra.mrb[0].mxu0 %v216
    %v320 = vpop.f32.mrb[0].mxu0
    %v321 = vadd.f32 %v242, %v320
    %v322 = vpop.f32.mrb[0].mxu0
    %323 = vmatprep.mubr.f32.mxu0 0.0
    %324 = vmatmul.mubr.f32.gmra.mrb[0].mxu0 %v217
    %v325 = vpop.f32.mrb[0].mxu0
    %v326 = vadd.f32 %v242, %v325
    %v327 = vpop.f32.mrb[0].mxu0
    %328 = vmatprep.mubr.f32.mxu0 0.0
    %329 = vmatmul.mubr.f32.gmra.mrb[0].mxu0 %v218
    %v330 = vpop.f32.mrb[0].mxu0
    %v331 = vadd.f32 %v242, %v330
    %v332 = vpop.f32.mrb[0].mxu0
    %333 = vmatprep.mubr.f32.mxu0 0.0
    %334 = vmatmul.mubr.f32.gmra.mrb[0].mxu0 %v219
    %v335 = vpop.f32.mrb[0].mxu0
    %v336 = vadd.f32 %v242, %v335
    %v337 = vpop.f32.mrb[0].mxu0
    %338 = vmatprep.mubr.f32.mxu0 0.0
    %339 = vmatmul.mubr.f32.gmra.mrb[0].mxu0 %v220
    %v340 = vpop.f32.mrb[0].mxu0
    %v341 = vadd.f32 %v242, %v340
    %v342 = vpop.f32.mrb[0].mxu0
    %343 = vmatprep.mubr.f32.mxu0 0.0
    %344 = vmatmul.mubr.f32.gmra.mrb[0].mxu0 %v221
    %v345 = vpop.f32.mrb[0].mxu0
    %v346 = vadd.f32 %v242, %v345
    %v347 = vpop.f32.mrb[0].mxu0
    %348 = vdwg.mxu0
    %v349 = vmax.f32 %v311, 0.0
    %v350 = vmax.f32 %v316, 0.0
    %v351 = vmax.f32 %v321, 0.0
    %v352 = vmax.f32 %v326, 0.0
    %v353 = vmax.f32 %v331, 0.0
    %v354 = vmax.f32 %v336, 0.0
    %v355 = vmax.f32 %v341, 0.0
    %v356 = vmax.f32 %v346, 0.0
    %357 = vst [vmem:[#allocation3] sm:$0xff] %v349
    %358 = vst [vmem:[#allocation3 + $0x8] sm:$0xff] %v350
    %359 = vst [vmem:[#allocation3 + $0x10] sm:$0xff] %v351
    %360 = vst [vmem:[#allocation3 + $0x18] sm:$0xff] %v352
    %361 = vst [vmem:[#allocation3 + $0x20] sm:$0xff] %v353
    %362 = vst [vmem:[#allocation3 + $0x28] sm:$0xff] %v354
    %363 = vst [vmem:[#allocation3 + $0x30] sm:$0xff] %v355
    %364 = vst [vmem:[#allocation3 + $0x38] sm:$0xff] %v356
    %v365 = vld [vmem:[#allocation2] sm:$0xff]
    %v366 = vld [vmem:[#allocation2 + $0x8] sm:$0xff]
    %v367 = vld [vmem:[#allocation2 + $0x10] sm:$0xff]
    %v368 = vld [vmem:[#allocation2 + $0x18] sm:$0xff]
    %v369 = vld [vmem:[#allocation3] sm:$0xff]
    %v370 = vld [vmem:[#allocation3 + $0x8] sm:$0xff]
    %v371 = vld [vmem:[#allocation3 + $0x10] sm:$0xff]
    %v372 = vld [vmem:[#allocation3 + $0x18] sm:$0xff]
    %v373 = vld [vmem:[#allocation3 + $0x20] sm:$0xff]
    %v374 = vld [vmem:[#allocation3 + $0x28] sm:$0xff]
    %v375 = vld [vmem:[#allocation3 + $0x30] sm:$0xff]
    %v376 = vld [vmem:[#allocation3 + $0x38] sm:$0xff]
    %v377 = vld [vmem:[#allocation10] sm:$0xff]
    %v378 = vld [vmem:[#allocation10 + $0x8] sm:$0xff]
    %v379 = vld [vmem:[#allocation10 + $0x10] sm:$0xff]
    %v380 = vld [vmem:[#allocation10 + $0x18] sm:$0xff]
    %v381 = vld [vmem:[#allocation10 + $0x20] sm:$0xff]
    %v382 = vld [vmem:[#allocation10 + $0x28] sm:$0xff]
    %v383 = vld [vmem:[#allocation10 + $0x30] sm:$0xff]
    %v384 = vld [vmem:[#allocation10 + $0x38] sm:$0xff]
    %v385 = vld [vmem:[#allocation10 + $0x40] sm:$0xff]
    %v386 = vld [vmem:[#allocation10 + $0x48] sm:$0xff]
    %v387 = vld [vmem:[#allocation10 + $0x50] sm:$0xff]
    %v388 = vld [vmem:[#allocation10 + $0x58] sm:$0xff]
    %v389 = vld [vmem:[#allocation10 + $0x60] sm:$0xff]
    %v390 = vld [vmem:[#allocation10 + $0x68] sm:$0xff]
    %v391 = vld [vmem:[#allocation10 + $0x70] sm:$0xff]
    %v392 = vld [vmem:[#allocation10 + $0x78] sm:$0xff]
    %393 = vmatprep.subr.mxu0 0.0
    %394 = vmatpush1.msra.mxu0 %v377
    %395 = vmatprep.subr.mxu0 0.0
    %396 = vmatpush1.msra.mxu0 %v378
    %397 = vmatprep.subr.mxu0 0.0
    %398 = vmatpush1.msra.mxu0 %v379
    %399 = vmatprep.subr.mxu0 0.0
    %400 = vmatpush1.msra.mxu0 %v380
    %401 = vmatprep.subr.mxu0 0.0
    %402 = vmatpush1.msra.mxu0 %v381
    %403 = vmatprep.subr.mxu0 0.0
    %404 = vmatpush1.msra.mxu0 %v382
    %405 = vmatprep.subr.mxu0 0.0
    %406 = vmatpush1.msra.mxu0 %v383
    %407 = vmatprep.subr.mxu0 0.0
    %408 = vmatpush1.msra.mxu0 %v384
    %409 = vmatprep.subr.mxu0 0.0
    %410 = vmatpush1.msra.mxu0 %v385
    %411 = vmatprep.subr.mxu0 0.0
    %412 = vmatpush1.msra.mxu0 %v386
    %413 = vmatprep.subr.mxu0 0.0
    %414 = vmatpush1.msra.mxu0 %v387
    %415 = vmatprep.subr.mxu0 0.0
    %416 = vmatpush1.msra.mxu0 %v388
    %417 = vmatprep.subr.mxu0 0.0
    %418 = vmatpush1.msra.mxu0 %v389
    %419 = vmatprep.subr.mxu0 0.0
    %420 = vmatpush1.msra.mxu0 %v390
    %421 = vmatprep.subr.mxu0 0.0
    %422 = vmatpush1.msra.mxu0 %v391
    %423 = vmatprep.subr.mxu0 0.0
    %424 = vmatpush1.msra.mxu0 %v392
    %425 = vmatprep.subr.mxu0 0.0
    %426 = vmatpush1.msra.mxu0 0.0
    %427 = vmatprep.subr.mxu0 0.0
    %428 = vmatpush1.msra.mxu0 0.0
    %429 = vmatprep.subr.mxu0 0.0
    %430 = vmatpush1.msra.mxu0 0.0
    %431 = vmatprep.subr.mxu0 0.0
    %432 = vmatpush1.msra.mxu0 0.0
    %433 = vmatprep.subr.mxu0 0.0
    %434 = vmatpush1.msra.mxu0 0.0
    %435 = vmatprep.subr.mxu0 0.0
    %436 = vmatpush1.msra.mxu0 0.0
    %437 = vmatprep.subr.mxu0 0.0
    %438 = vmatpush1.msra.mxu0 0.0
    %439 = vmatprep.subr.mxu0 0.0
    %440 = vmatpush1.msra.mxu0 0.0
    %441 = vmatprep.subr.mxu0 0.0
    %442 = vmatpush1.msra.mxu0 0.0
    %443 = vmatprep.subr.mxu0 0.0
    %444 = vmatpush1.msra.mxu0 0.0
    %445 = vmatprep.subr.mxu0 0.0
    %446 = vmatpush1.msra.mxu0 0.0
    %447 = vmatprep.subr.mxu0 0.0
    %448 = vmatpush1.msra.mxu0 0.0
    %449 = vmatprep.subr.mxu0 0.0
    %450 = vmatpush1.msra.mxu0 0.0
    %451 = vmatprep.subr.mxu0 0.0
    %452 = vmatpush1.msra.mxu0 0.0
    %453 = vmatprep.subr.mxu0 0.0
    %454 = vmatpush1.msra.mxu0 0.0
    %455 = vmatprep.subr.mxu0 0.0
    %456 = vmatpush1.msra.mxu0 0.0
    %457 = vmatprep.mubr.f32.mxu0 0.0
    %458 = vmatmul.mubr.f32.gmra.mrb[0].mxu0 %v369
    %v459 = vpop.f32.mrb[0].mxu0
    %v460 = vadd.f32 0.0, %v459
    %v461 = vpop.f32.mrb[0].mxu0
    %462 = vmatprep.mubr.f32.mxu0 0.0
    %463 = vmatmul.mubr.f32.gmra.mrb[0].mxu0 %v370
    %v464 = vpop.f32.mrb[0].mxu0
    %v465 = vadd.f32 0.0, %v464
    %v466 = vpop.f32.mrb[0].mxu0
    %467 = vmatprep.mubr.f32.mxu0 0.0
    %468 = vmatmul.mubr.f32.gmra.mrb[0].mxu0 %v371
    %v469 = vpop.f32.mrb[0].mxu0
    %v470 = vadd.f32 0.0, %v469
    %v471 = vpop.f32.mrb[0].mxu0
    %472 = vmatprep.mubr.f32.mxu0 0.0
    %473 = vmatmul.mubr.f32.gmra.mrb[0].mxu0 %v372
    %v474 = vpop.f32.mrb[0].mxu0
    %v475 = vadd.f32 0.0, %v474
    %v476 = vpop.f32.mrb[0].mxu0
    %477 = vmatprep.mubr.f32.mxu0 0.0
    %478 = vmatmul.mubr.f32.gmra.mrb[0].mxu0 %v373
    %v479 = vpop.f32.mrb[0].mxu0
    %v480 = vadd.f32 0.0, %v479
    %v481 = vpop.f32.mrb[0].mxu0
    %482 = vmatprep.mubr.f32.mxu0 0.0
    %483 = vmatmul.mubr.f32.gmra.mrb[0].mxu0 %v374
    %v484 = vpop.f32.mrb[0].mxu0
    %v485 = vadd.f32 0.0, %v484
    %v486 = vpop.f32.mrb[0].mxu0
    %487 = vmatprep.mubr.f32.mxu0 0.0
    %488 = vmatmul.mubr.f32.gmra.mrb[0].mxu0 %v375
    %v489 = vpop.f32.mrb[0].mxu0
    %v490 = vadd.f32 0.0, %v489
    %v491 = vpop.f32.mrb[0].mxu0
    %492 = vmatprep.mubr.f32.mxu0 0.0
    %493 = vmatmul.mubr.f32.gmra.mrb[0].mxu0 %v376
    %v494 = vpop.f32.mrb[0].mxu0
    %v495 = vadd.f32 0.0, %v494
    %v496 = vpop.f32.mrb[0].mxu0
    %497 = vdwg.mxu0
    %v498 = vpack.c.bf16 %v465, %v460
    %v499 = vpack.c.bf16 %v475, %v470
    %v500 = vpack.c.bf16 %v485, %v480
    %v501 = vpack.c.bf16 %v495, %v490
    %v502 = vld [vmem:[%s5] sm:$0x1]
    %v504 = vlaneseq
    %v505 = vshrl.u32 %v504, 7
    %v506 = vsub.s32 0, %v505
    %v507 = vrot.slane %v502, %v506
    %v510 = vsel %vm142, %v365, 0
    %v513 = vsel %vm142, %v366, 0
    %v516 = vsel %vm142, %v367, 0
    %v519 = vsel %vm142, %v368, 0
    %521 = vmatprep.subr.bf16.mxu0 0
    %522 = vmatpush1.bf16.msra.mxu0 %v498
    %523 = vmatprep.subr.bf16.mxu0 0
    %524 = vmatpush1.bf16.msra.mxu0 %v499
    %525 = vmatprep.subr.bf16.mxu0 0
    %526 = vmatpush1.bf16.msra.mxu0 %v500
    %527 = vmatprep.subr.bf16.mxu0 0
    %528 = vmatpush1.bf16.msra.mxu0 %v501
    %529 = vmatprep.subr.bf16.mxu0 0
    %530 = vmatpush1.bf16.msra.mxu0 0
    %531 = vmatprep.subr.bf16.mxu0 0
    %532 = vmatpush1.bf16.msra.mxu0 0
    %533 = vmatprep.subr.bf16.mxu0 0
    %534 = vmatpush1.bf16.msra.mxu0 0
    %535 = vmatprep.subr.bf16.mxu0 0
    %536 = vmatpush1.bf16.msra.mxu0 0
    %537 = vmatprep.subr.bf16.mxu0 0
    %538 = vmatpush1.bf16.msra.mxu0 0
    %539 = vmatprep.subr.bf16.mxu0 0
    %540 = vmatpush1.bf16.msra.mxu0 0
    %541 = vmatprep.subr.bf16.mxu0 0
    %542 = vmatpush1.bf16.msra.mxu0 0
    %543 = vmatprep.subr.bf16.mxu0 0
    %544 = vmatpush1.bf16.msra.mxu0 0
    %545 = vmatprep.subr.bf16.mxu0 0
    %546 = vmatpush1.bf16.msra.mxu0 0
    %547 = vmatprep.subr.bf16.mxu0 0
    %548 = vmatpush1.bf16.msra.mxu0 0
    %549 = vmatprep.subr.bf16.mxu0 0
    %550 = vmatpush1.bf16.msra.mxu0 0
    %551 = vmatprep.subr.bf16.mxu0 0
    %552 = vmatpush1.bf16.msra.mxu0 0
    %553 = vmatprep.mubr.bf16.mxu0 0
    %554 = vmatmul.mubr.bf16.gmra.mrb[0].mxu0 %v510
    %v555 = vpop.f32.mrb[0].mxu0
    %v556 = vadd.f32 %v507, %v555
    %v557 = vpop.f32.mrb[0].mxu0
    %v558 = vpop.f32.mrb[0].mxu0
    %v559 = vadd.f32 %v507, %v558
    %v560 = vpop.f32.mrb[0].mxu0
    %561 = vmatprep.mubr.bf16.mxu0 0
    %562 = vmatmul.mubr.bf16.gmra.mrb[0].mxu0 %v513
    %v563 = vpop.f32.mrb[0].mxu0
    %v564 = vadd.f32 %v507, %v563
    %v565 = vpop.f32.mrb[0].mxu0
    %v566 = vpop.f32.mrb[0].mxu0
    %v567 = vadd.f32 %v507, %v566
    %v568 = vpop.f32.mrb[0].mxu0
    %569 = vmatprep.mubr.bf16.mxu0 0
    %570 = vmatmul.mubr.bf16.gmra.mrb[0].mxu0 %v516
    %v571 = vpop.f32.mrb[0].mxu0
    %v572 = vadd.f32 %v507, %v571
    %v573 = vpop.f32.mrb[0].mxu0
    %v574 = vpop.f32.mrb[0].mxu0
    %v575 = vadd.f32 %v507, %v574
    %v576 = vpop.f32.mrb[0].mxu0
    %577 = vmatprep.mubr.bf16.mxu0 0
    %578 = vmatmul.mubr.bf16.gmra.mrb[0].mxu0 %v519
    %v579 = vpop.f32.mrb[0].mxu0
    %v580 = vadd.f32 %v507, %v579
    %v581 = vpop.f32.mrb[0].mxu0
    %v582 = vpop.f32.mrb[0].mxu0
    %v583 = vadd.f32 %v507, %v582
    %v584 = vpop.f32.mrb[0].mxu0
    %585 = vdwg.mxu0
    %v586 = vmax.f32 %v556, 0.0
    %v587 = vmax.f32 %v559, 0.0
    %v588 = vmax.f32 %v564, 0.0
    %v589 = vmax.f32 %v567, 0.0
    %v590 = vmax.f32 %v572, 0.0
    %v591 = vmax.f32 %v575, 0.0
    %v592 = vmax.f32 %v580, 0.0
    %v593 = vmax.f32 %v583, 0.0
    %594 = vst [vmem:[#allocation3] sm:$0xff] %v586
    %595 = vst [vmem:[#allocation3 + $0x8] sm:$0xff] %v587
    %596 = vst [vmem:[#allocation3 + $0x10] sm:$0xff] %v588
    %597 = vst [vmem:[#allocation3 + $0x18] sm:$0xff] %v589
    %598 = vst [vmem:[#allocation3 + $0x20] sm:$0xff] %v590
    %599 = vst [vmem:[#allocation3 + $0x28] sm:$0xff] %v591
    %600 = vst [vmem:[#allocation3 + $0x30] sm:$0xff] %v592
    %601 = vst [vmem:[#allocation3 + $0x38] sm:$0xff] %v593
    %v602 = vld [vmem:[%s7] sm:$0x1]
    %v603 = vld [vmem:[#allocation3] sm:$0xff]
    %v604 = vld [vmem:[#allocation3 + $0x8] sm:$0xff]
    %v605 = vld [vmem:[#allocation3 + $0x10] sm:$0xff]
    %v606 = vld [vmem:[#allocation3 + $0x18] sm:$0xff]
    %v607 = vld [vmem:[#allocation3 + $0x20] sm:$0xff]
    %v608 = vld [vmem:[#allocation3 + $0x28] sm:$0xff]
    %v609 = vld [vmem:[#allocation3 + $0x30] sm:$0xff]
    %v610 = vld [vmem:[#allocation3 + $0x38] sm:$0xff]
    %v611 = vld [vmem:[#allocation12] sm:$0xff]
    %v612 = vld [vmem:[#allocation12 + $0x8] sm:$0xff]
    %v613 = vld [vmem:[#allocation12 + $0x10] sm:$0xff]
    %v614 = vld [vmem:[#allocation12 + $0x18] sm:$0xff]
    %v615 = vld [vmem:[#allocation12 + $0x20] sm:$0xff]
    %v616 = vld [vmem:[#allocation12 + $0x28] sm:$0xff]
    %v617 = vld [vmem:[#allocation12 + $0x30] sm:$0xff]
    %v618 = vld [vmem:[#allocation12 + $0x38] sm:$0xff]
    %v619 = vld [vmem:[#allocation12 + $0x40] sm:$0xff]
    %v620 = vld [vmem:[#allocation12 + $0x48] sm:$0xff]
    %v621 = vld [vmem:[#allocation12 + $0x50] sm:$0xff]
    %v622 = vld [vmem:[#allocation12 + $0x58] sm:$0xff]
    %v623 = vld [vmem:[#allocation12 + $0x60] sm:$0xff]
    %v624 = vld [vmem:[#allocation12 + $0x68] sm:$0xff]
    %v625 = vld [vmem:[#allocation12 + $0x70] sm:$0xff]
    %v626 = vld [vmem:[#allocation12 + $0x78] sm:$0xff]
    %627 = vmatprep.subr.mxu0 0.0
    %628 = vmatpush1.msra.mxu0 %v611
    %629 = vmatprep.subr.mxu0 0.0
    %630 = vmatpush1.msra.mxu0 %v612
    %631 = vmatprep.subr.mxu0 0.0
    %632 = vmatpush1.msra.mxu0 %v613
    %633 = vmatprep.subr.mxu0 0.0
    %634 = vmatpush1.msra.mxu0 %v614
    %635 = vmatprep.subr.mxu0 0.0
    %636 = vmatpush1.msra.mxu0 %v615
    %637 = vmatprep.subr.mxu0 0.0
    %638 = vmatpush1.msra.mxu0 %v616
    %639 = vmatprep.subr.mxu0 0.0
    %640 = vmatpush1.msra.mxu0 %v617
    %641 = vmatprep.subr.mxu0 0.0
    %642 = vmatpush1.msra.mxu0 %v618
    %643 = vmatprep.subr.mxu0 0.0
    %644 = vmatpush1.msra.mxu0 %v619
    %645 = vmatprep.subr.mxu0 0.0
    %646 = vmatpush1.msra.mxu0 %v620
    %647 = vmatprep.subr.mxu0 0.0
    %648 = vmatpush1.msra.mxu0 %v621
    %649 = vmatprep.subr.mxu0 0.0
    %650 = vmatpush1.msra.mxu0 %v622
    %651 = vmatprep.subr.mxu0 0.0
    %652 = vmatpush1.msra.mxu0 %v623
    %653 = vmatprep.subr.mxu0 0.0
    %654 = vmatpush1.msra.mxu0 %v624
    %655 = vmatprep.subr.mxu0 0.0
    %656 = vmatpush1.msra.mxu0 %v625
    %657 = vmatprep.subr.mxu0 0.0
    %658 = vmatpush1.msra.mxu0 %v626
    %659 = vmatprep.subr.mxu0 0.0
    %660 = vmatpush1.msra.mxu0 0.0
    %661 = vmatprep.subr.mxu0 0.0
    %662 = vmatpush1.msra.mxu0 0.0
    %663 = vmatprep.subr.mxu0 0.0
    %664 = vmatpush1.msra.mxu0 0.0
    %665 = vmatprep.subr.mxu0 0.0
    %666 = vmatpush1.msra.mxu0 0.0
    %667 = vmatprep.subr.mxu0 0.0
    %668 = vmatpush1.msra.mxu0 0.0
    %669 = vmatprep.subr.mxu0 0.0
    %670 = vmatpush1.msra.mxu0 0.0
    %671 = vmatprep.subr.mxu0 0.0
    %672 = vmatpush1.msra.mxu0 0.0
    %673 = vmatprep.subr.mxu0 0.0
    %674 = vmatpush1.msra.mxu0 0.0
    %675 = vmatprep.subr.mxu0 0.0
    %676 = vmatpush1.msra.mxu0 0.0
    %677 = vmatprep.subr.mxu0 0.0
    %678 = vmatpush1.msra.mxu0 0.0
    %679 = vmatprep.subr.mxu0 0.0
    %680 = vmatpush1.msra.mxu0 0.0
    %681 = vmatprep.subr.mxu0 0.0
    %682 = vmatpush1.msra.mxu0 0.0
    %683 = vmatprep.subr.mxu0 0.0
    %684 = vmatpush1.msra.mxu0 0.0
    %685 = vmatprep.subr.mxu0 0.0
    %686 = vmatpush1.msra.mxu0 0.0
    %687 = vmatprep.subr.mxu0 0.0
    %688 = vmatpush1.msra.mxu0 0.0
    %689 = vmatprep.subr.mxu0 0.0
    %690 = vmatpush1.msra.mxu0 0.0
    %691 = vmatprep.mubr.f32.mxu0 0.0
    %692 = vmatmul.mubr.f32.gmra.mrb[0].mxu0 %v603
    %v693 = vpop.f32.mrb[0].mxu0
    %v694 = vadd.f32 0.0, %v693
    %v695 = vpop.f32.mrb[0].mxu0
    %696 = vmatprep.mubr.f32.mxu0 0.0
    %697 = vmatmul.mubr.f32.gmra.mrb[0].mxu0 %v604
    %v698 = vpop.f32.mrb[0].mxu0
    %v699 = vadd.f32 0.0, %v698
    %v700 = vpop.f32.mrb[0].mxu0
    %701 = vmatprep.mubr.f32.mxu0 0.0
    %702 = vmatmul.mubr.f32.gmra.mrb[0].mxu0 %v605
    %v703 = vpop.f32.mrb[0].mxu0
    %v704 = vadd.f32 0.0, %v703
    %v705 = vpop.f32.mrb[0].mxu0
    %706 = vmatprep.mubr.f32.mxu0 0.0
    %707 = vmatmul.mubr.f32.gmra.mrb[0].mxu0 %v606
    %v708 = vpop.f32.mrb[0].mxu0
    %v709 = vadd.f32 0.0, %v708
    %v710 = vpop.f32.mrb[0].mxu0
    %711 = vmatprep.mubr.f32.mxu0 0.0
    %712 = vmatmul.mubr.f32.gmra.mrb[0].mxu0 %v607
    %v713 = vpop.f32.mrb[0].mxu0
    %v714 = vadd.f32 0.0, %v713
    %v715 = vpop.f32.mrb[0].mxu0
    %716 = vmatprep.mubr.f32.mxu0 0.0
    %717 = vmatmul.mubr.f32.gmra.mrb[0].mxu0 %v608
    %v718 = vpop.f32.mrb[0].mxu0
    %v719 = vadd.f32 0.0, %v718
    %v720 = vpop.f32.mrb[0].mxu0
    %721 = vmatprep.mubr.f32.mxu0 0.0
    %722 = vmatmul.mubr.f32.gmra.mrb[0].mxu0 %v609
    %v723 = vpop.f32.mrb[0].mxu0
    %v724 = vadd.f32 0.0, %v723
    %v725 = vpop.f32.mrb[0].mxu0
    %726 = vmatprep.mubr.f32.mxu0 0.0
    %727 = vmatmul.mubr.f32.gmra.mrb[0].mxu0 %v610
    %v728 = vpop.f32.mrb[0].mxu0
    %v729 = vadd.f32 0.0, %v728
    %v730 = vpop.f32.mrb[0].mxu0
    %731 = vdwg.mxu0
    %v732 = vpack.c.bf16 %v699, %v694
    %v733 = vpack.c.bf16 %v709, %v704
    %v734 = vpack.c.bf16 %v719, %v714
    %v735 = vpack.c.bf16 %v729, %v724
    %v737 = vlaneseq
    %v738 = vshrl.u32 %v737, 7
    %v739 = vsub.s32 0, %v738
    %v740 = vrot.slane %v602, %v739
    %742 = vmatprep.subr.bf16.mxu0 0
    %743 = vmatpush1.bf16.msra.mxu0 %v732
    %744 = vmatprep.subr.bf16.mxu0 0
    %745 = vmatpush1.bf16.msra.mxu0 %v733
    %746 = vmatprep.subr.bf16.mxu0 0
    %747 = vmatpush1.bf16.msra.mxu0 %v734
    %748 = vmatprep.subr.bf16.mxu0 0
    %749 = vmatpush1.bf16.msra.mxu0 %v735
    %750 = vmatprep.subr.bf16.mxu0 0
    %751 = vmatpush1.bf16.msra.mxu0 0
    %752 = vmatprep.subr.bf16.mxu0 0
    %753 = vmatpush1.bf16.msra.mxu0 0
    %754 = vmatprep.subr.bf16.mxu0 0
    %755 = vmatpush1.bf16.msra.mxu0 0
    %756 = vmatprep.subr.bf16.mxu0 0
    %757 = vmatpush1.bf16.msra.mxu0 0
    %758 = vmatprep.subr.bf16.mxu0 0
    %759 = vmatpush1.bf16.msra.mxu0 0
    %760 = vmatprep.subr.bf16.mxu0 0
    %761 = vmatpush1.bf16.msra.mxu0 0
    %762 = vmatprep.subr.bf16.mxu0 0
    %763 = vmatpush1.bf16.msra.mxu0 0
    %764 = vmatprep.subr.bf16.mxu0 0
    %765 = vmatpush1.bf16.msra.mxu0 0
    %766 = vmatprep.subr.bf16.mxu0 0
    %767 = vmatpush1.bf16.msra.mxu0 0
    %768 = vmatprep.subr.bf16.mxu0 0
    %769 = vmatpush1.bf16.msra.mxu0 0
    %770 = vmatprep.subr.bf16.mxu0 0
    %771 = vmatpush1.bf16.msra.mxu0 0
    %772 = vmatprep.subr.bf16.mxu0 0
    %773 = vmatpush1.bf16.msra.mxu0 0
    %774 = vmatprep.mubr.bf16.mxu0 0
    %775 = vmatmul.mubr.bf16.gmra.mrb[0].mxu0 %v510
    %v776 = vpop.f32.mrb[0].mxu0
    %v777 = vadd.f32 %v740, %v776
    %v778 = vpop.f32.mrb[0].mxu0
    %v779 = vpop.f32.mrb[0].mxu0
    %v780 = vadd.f32 %v740, %v779
    %v781 = vpop.f32.mrb[0].mxu0
    %782 = vmatprep.mubr.bf16.mxu0 0
    %783 = vmatmul.mubr.bf16.gmra.mrb[0].mxu0 %v513
    %v784 = vpop.f32.mrb[0].mxu0
    %v785 = vadd.f32 %v740, %v784
    %v786 = vpop.f32.mrb[0].mxu0
    %v787 = vpop.f32.mrb[0].mxu0
    %v788 = vadd.f32 %v740, %v787
    %v789 = vpop.f32.mrb[0].mxu0
    %790 = vmatprep.mubr.bf16.mxu0 0
    %791 = vmatmul.mubr.bf16.gmra.mrb[0].mxu0 %v516
    %v792 = vpop.f32.mrb[0].mxu0
    %v793 = vadd.f32 %v740, %v792
    %v794 = vpop.f32.mrb[0].mxu0
    %v795 = vpop.f32.mrb[0].mxu0
    %v796 = vadd.f32 %v740, %v795
    %v797 = vpop.f32.mrb[0].mxu0
    %798 = vmatprep.mubr.bf16.mxu0 0
    %799 = vmatmul.mubr.bf16.gmra.mrb[0].mxu0 %v519
    %v800 = vpop.f32.mrb[0].mxu0
    %v801 = vadd.f32 %v740, %v800
    %v802 = vpop.f32.mrb[0].mxu0
    %v803 = vpop.f32.mrb[0].mxu0
    %v804 = vadd.f32 %v740, %v803
    %v805 = vpop.f32.mrb[0].mxu0
    %806 = vdwg.mxu0
    %vm807 = vcmp.lt.s32.totalorder %v117, 8
    %v808 = vsel %vm807, %v777, -1e+30
    %v809 = vsel %vm807, %v780, -1e+30
    %v810 = vsel %vm807, %v785, -1e+30
    %v811 = vsel %vm807, %v788, -1e+30
    %v812 = vsel %vm807, %v793, -1e+30
    %v813 = vsel %vm807, %v796, -1e+30
    %v814 = vsel %vm807, %v801, -1e+30
    %v815 = vsel %vm807, %v804, -1e+30
    %816 = vmax.xlane.f32.xlu0 %v808
    %v817 = vpop.xlane.xlu0 %816
    %818 = vmax.xlane.f32.xlu0 %v809
    %v819 = vpop.xlane.xlu0 %818
    %820 = vmax.xlane.f32.xlu0 %v810
    %v821 = vpop.xlane.xlu0 %820
    %822 = vmax.xlane.f32.xlu0 %v811
    %v823 = vpop.xlane.xlu0 %822
    %824 = vmax.xlane.f32.xlu0 %v812
    %v825 = vpop.xlane.xlu0 %824
    %826 = vmax.xlane.f32.xlu0 %v813
    %v827 = vpop.xlane.xlu0 %826
    %828 = vmax.xlane.f32.xlu0 %v814
    %v829 = vpop.xlane.xlu0 %828
    %830 = vmax.xlane.f32.xlu0 %v815
    %v831 = vpop.xlane.xlu0 %830
    %v832 = vsub.f32 %v808, %v817
    %v833 = vsub.f32 %v809, %v819
    %v834 = vsub.f32 %v810, %v821
    %v835 = vsub.f32 %v811, %v823
    %v836 = vsub.f32 %v812, %v825
    %v837 = vsub.f32 %v813, %v827
    %v838 = vsub.f32 %v814, %v829
    %v839 = vsub.f32 %v815, %v831
    %v840 = vmul.f32 %v832, 1.442695
    %v841 = vpow.pop %v840
    %v842 = vmul.f32 %v833, 1.442695
    %v843 = vpow.pop %v842
    %v844 = vmul.f32 %v834, 1.442695
    %v845 = vpow.pop %v844
    %v846 = vmul.f32 %v835, 1.442695
    %v847 = vpow.pop %v846
    %v848 = vmul.f32 %v836, 1.442695
    %v849 = vpow.pop %v848
    %v850 = vmul.f32 %v837, 1.442695
    %v851 = vpow.pop %v850
    %v852 = vmul.f32 %v838, 1.442695
    %v853 = vpow.pop %v852
    %v854 = vmul.f32 %v839, 1.442695
    %v855 = vpow.pop %v854
    %856 = vadd.xlane.f32.xlu0 %v841
    %v857 = vpop.xlane.xlu0 %856
    %858 = vadd.xlane.f32.xlu0 %v843
    %v859 = vpop.xlane.xlu0 %858
    %860 = vadd.xlane.f32.xlu0 %v845
    %v861 = vpop.xlane.xlu0 %860
    %862 = vadd.xlane.f32.xlu0 %v847
    %v863 = vpop.xlane.xlu0 %862
    %864 = vadd.xlane.f32.xlu0 %v849
    %v865 = vpop.xlane.xlu0 %864
    %866 = vadd.xlane.f32.xlu0 %v851
    %v867 = vpop.xlane.xlu0 %866
    %868 = vadd.xlane.f32.xlu0 %v853
    %v869 = vpop.xlane.xlu0 %868
    %870 = vadd.xlane.f32.xlu0 %v855
    %v871 = vpop.xlane.xlu0 %870
    %v872 = vlog2.pop %v857
    %v873 = vmul.f32 %v872, 0.6931472
    %v874 = vlog2.pop %v859
    %v875 = vmul.f32 %v874, 0.6931472
    %v876 = vlog2.pop %v861
    %v877 = vmul.f32 %v876, 0.6931472
    %v878 = vlog2.pop %v863
    %v879 = vmul.f32 %v878, 0.6931472
    %v880 = vlog2.pop %v865
    %v881 = vmul.f32 %v880, 0.6931472
    %v882 = vlog2.pop %v867
    %v883 = vmul.f32 %v882, 0.6931472
    %v884 = vlog2.pop %v869
    %v885 = vmul.f32 %v884, 0.6931472
    %v886 = vlog2.pop %v871
    %v887 = vmul.f32 %v886, 0.6931472
    %v888 = vsub.f32 %v832, %v873
    %v889 = vsub.f32 %v833, %v875
    %v890 = vsub.f32 %v834, %v877
    %v891 = vsub.f32 %v835, %v879
    %v892 = vsub.f32 %v836, %v881
    %v893 = vsub.f32 %v837, %v883
    %v894 = vsub.f32 %v838, %v885
    %v895 = vsub.f32 %v839, %v887
    %896 = vst [vmem:[#allocation13] sm:$0xff] %v888
    %897 = vst [vmem:[#allocation13 + $0x8] sm:$0xff] %v889
    %898 = vst [vmem:[#allocation13 + $0x10] sm:$0xff] %v890
    %899 = vst [vmem:[#allocation13 + $0x18] sm:$0xff] %v891
    %900 = vst [vmem:[#allocation13 + $0x20] sm:$0xff] %v892
    %901 = vst [vmem:[#allocation13 + $0x28] sm:$0xff] %v893
    %902 = vst [vmem:[#allocation13 + $0x30] sm:$0xff] %v894
    %903 = vst [vmem:[#allocation13 + $0x38] sm:$0xff] %v895
    // Predicated region
    $region54: #{tpu_custom_call.1} parent=1 // pred_check
      _
    $region55: #{tpu_custom_call.1} parent=1 // pred_check_branch
      %905 = sbr.rel (0) target = $region57
    $region56: #{tpu_custom_call.1} parent=1 // pred_region
      %s907 = ssub.s32 1024, 1024
      %908 = vsyncadd [#allocation6], %s907
      %s909 = sshll.u32 [#allocation13], 4
      %s910 = int_to_ptr.vmem [resolvable:$true] %s909
      %915 = dma.vmem_to_hbm [thread:$0]  %s910, 1024, %s8, [#allocation6], 128, 128, 8
    $region57: #{tpu_custom_call.1} parent=1 // pred_fallthru
      _
    // Predicated region
    $region58: #{tpu_custom_call.1} parent=1 // pred_check
      _
    $region59: #{tpu_custom_call.1} parent=1 // pred_check_branch
      %917 = sbr.rel (0) target = $region61
    $region60: #{tpu_custom_call.1} parent=1 // pred_region
      %918 = dma.done [#allocation6], 1024
    $region61: #{tpu_custom_call.1} parent=1 // pred_fallthru
      _
    %919 = vsyncpa [#allocation5], 1
    %920 = vsyncpa [#allocation8], 1
    %921 = vsyncpa [#allocation11], 1
    %922 = vsyncpa [#allocation6], 1

</llo_original>
